<compile_context>
chip_gen: v5e
topology: v5e:2x2
jax: 0.10.0
libtpu: 0.0.40
codegen_flags: <defaults>
</compile_context>

<pallas_src>
import functools
import math

import jax
import jax.numpy as jnp
from jax.experimental import pallas as pl
from jax.experimental.pallas import tpu as pltpu

KERNEL_CONV = 7   # kernel_size_conv
POOL = 4          # kernel_size_pool
BN_EPS = 1e-5


# ----------------------------------------------------------------------------
# pltpu.roll direction probe (run once, cached). The conv shift math needs
# result[i] == x[(i - shift) % n] (jnp.roll convention); probe it on-device so
# the kernel is robust across Mosaic versions instead of hard-coding the sign.
# ----------------------------------------------------------------------------
_ROLL_NUMPY_LIKE = None


def _roll_is_numpy_like():
    global _ROLL_NUMPY_LIKE
    if _ROLL_NUMPY_LIKE is None:
        def _probe(x_ref, o_ref):
            o_ref[...] = pltpu.roll(x_ref[...], shift=1, axis=0)

        x = jnp.arange(8 * 128, dtype=jnp.float32).reshape(8, 128)
        try:
            y = pl.pallas_call(
                _probe, out_shape=jax.ShapeDtypeStruct((8, 128), jnp.float32))(x)
            _ROLL_NUMPY_LIKE = bool(jnp.all(y[1] == x[0]))
        except Exception:
            _ROLL_NUMPY_LIKE = True
    return _ROLL_NUMPY_LIKE


def deepphylo_kernel(x_ref, phy_ref,
                     w_ab_ref, b_ab_ref,
                     w_conv_ref, b_conv_ref,     # BatchNorm already folded in; (K, H, H)
                     w_pred_ref, b_pred_ref,     # w_pred as (1, H) row; b_pred scalar in SMEM
                     out_ref, *, used, roll_numpy_like):
    TB, L_pad, H = phy_ref.shape
    K = w_conv_ref.shape[0]
    TBL = TB * L_pad

    # --- fc_abundance: Linear(D_in, H) + ReLU (f32 MXU, tiny) ---------------
    x_ab = jnp.dot(x_ref[...], w_ab_ref[...], preferred_element_type=jnp.float32)
    x_ab = jnp.maximum(x_ab + b_ab_ref[...], 0.0)                      # (TB, H) f32

    # --- Conv1d(H, H, K): K full-length matmuls + XLU sublane rolls ---------
    # conv[b, t, :] = sum_k phy[b, t+k, :] @ W_k.  Each matmul consumes the whole
    # tile-aligned phy (no slicing), then the k-th contribution is shifted back by
    # k rows with a sublane roll.  Wrapped / padded rows only land at t >= used,
    # which the mask below removes.  L_pad % 8 == 0 so both reshapes are copy-free.
    phy2 = phy_ref[...].reshape(TBL, H)                                # bf16
    acc = jnp.dot(phy2, w_conv_ref[0], preferred_element_type=jnp.float32)
    for k in range(1, K):
        c_k = jnp.dot(phy2, w_conv_ref[k], preferred_element_type=jnp.float32)
        shift = (TBL - k) if roll_numpy_like else k                    # result[r] = c_k[r + k]
        acc = acc + pltpu.roll(c_k, shift=shift, axis=0)
    conv = jnp.maximum(acc + b_conv_ref[...], 0.0).reshape(TB, L_pad, H)

    # --- MaxPool1d(POOL) then max over time == masked max over t < used -----
    # (ReLU output >= 0, so masking with 0 is exact; no misaligned :used slice.)
    t_idx = jax.lax.broadcasted_iota(jnp.int32, conv.shape, 1)
    x_conv = jnp.max(jnp.where(t_idx < used, conv, 0.0), axis=1)       # (TB, H) f32

    # --- fuse + fc_pred: Linear(H, 1) + Sigmoid (VPU mul + lane reduce) ------
    fused = x_ab * x_conv
    logit = jnp.sum(fused * w_pred_ref[...], axis=-1, keepdims=True)   # (TB, 1)
    out_ref[...] = jax.nn.sigmoid(logit + b_pred_ref[0, 0])


def deepphylo_forward(x, ids, params):
    B, L = ids.shape
    D_in = x.shape[-1]
    H = params["w_ab"].shape[1]
    K = KERNEL_CONV
    Lp = L - K + 1
    assert L >= K, f"sequence length {L} must be >= conv kernel {K}"
    assert Lp >= POOL, f"conv output length {Lp} must be >= pool kernel {POOL}"

    used = POOL * (Lp // POOL)          # region kept by MaxPool(POOL) + max over time
    L_pad = 8 * pl.cdiv(L, 8)           # tile-aligned sequence length

    # fc_phy precomputed on the frozen embedding table (exact in eval mode):
    # one (V, E) x (E, H) matmul, then the gather fetches already-projected rows.
    # TODO(synk): cache emb_proj across calls, or gather rows in-kernel
    # (scalar-prefetched ids + DMA from an ANY-space table) to remove the
    # (B, L, H) HBM round trip entirely.
    emb_proj = (params["embedding"] @ params["w_phy"] + params["b_phy"]).astype(jnp.bfloat16)

    # Pad the sequence axis with a valid index (0); padded rows only influence
    # conv positions t >= used, which the in-kernel mask discards.
    if L_pad > L:
        ids = jnp.concatenate(
            [ids, jnp.zeros((B, L_pad - L), dtype=ids.dtype)], axis=1)
    phy = emb_proj[ids]                                               # (B, L_pad, H) bf16

    # Fold eval-mode BatchNorm1d into the conv weight / bias (exact in eval mode).
    scale = params["bn_g"] * jax.lax.rsqrt(params["bn_v"] + BN_EPS)          # (1, H) over out-ch
    w_conv_folded = params["w_conv"] * scale                                 # (K, H, H)
    b_conv_folded = (params["b_conv"] - params["bn_m"]) * scale + params["bn_b"]

    args = (x.astype(jnp.float32), phy,
            params["w_ab"].astype(jnp.float32), params["b_ab"].astype(jnp.float32),
            w_conv_folded.astype(jnp.bfloat16), b_conv_folded.astype(jnp.float32),
            params["w_pred"].reshape(1, H).astype(jnp.float32),
            params["b_pred"].reshape(1, 1).astype(jnp.float32))

    # Batch tile: >= 2 grid steps when B > 8 (lets 2-TC chips shard the "parallel"
    # batch axis), 8-aligned, <= 128, and capped by a per-step VMEM budget.
    row_bytes = 14 * L_pad * H + 8 * D_in + 64 * H     # phy bufs + f32 conv temps per row
    if B <= 8:
        TB = B
    else:
        TB = min(128, ((B + 1) // 2 + 7) // 8 * 8)
        TB = max(8, min(TB, (24 * 1024 * 1024) // max(row_bytes, 1) // 8 * 8))
    grid = (pl.cdiv(B, TB),)

    # VMEM budget from the actual working set, clamped per-generation
    # (3/4 of capacity: ~96 MiB on v5e/v6e, ~48 MiB on v7x).
    in_tile = TB * D_in * 4 + TB * L_pad * H * 2
    weights = (K * H * H) * 2 + (D_in * H + 3 * H + 1) * 4
    temps = 2 * TB * L_pad * H * 4 + 8 * TB * H * 4
    working = 2 * in_tile + 2 * weights + temps + 2 * TB * 4
    try:
        vmem_cap = int(pltpu.get_tpu_info().vmem_capacity_bytes)
    except Exception:
        vmem_cap = 64 * 1024 * 1024
    vmem_limit = int(min(max(2 * working, 32 * 1024 * 1024), 3 * vmem_cap // 4))

    in_specs = [
        pl.BlockSpec((TB, D_in), lambda i: (i, 0)),            # x
        pl.BlockSpec((TB, L_pad, H), lambda i: (i, 0, 0)),     # phy (projected embeddings)
        # TODO(synk): single-buffer the constant weights (pipeline_mode=pl.Buffered(1))
        # once verified on the target jax build; default double-buffering costs 2x here.
        pl.BlockSpec((D_in, H), lambda i: (0, 0)),             # w_ab
        pl.BlockSpec((1, H), lambda i: (0, 0)),                # b_ab
        pl.BlockSpec((K, H, H), lambda i: (0, 0, 0)),          # w_conv (BN folded)
        pl.BlockSpec((1, H), lambda i: (0, 0)),                # b_conv (BN folded)
        pl.BlockSpec((1, H), lambda i: (0, 0)),                # w_pred row
        pl.BlockSpec(memory_space=pltpu.MemorySpace.SMEM),     # b_pred scalar
    ]
    # Narrow (TB, 1) output block: total output traffic is B floats (negligible).
    # A lane-dense (1, TB) variant needs TB % 128 == 0 blocks, which would conflict
    # with the >=2-grid-step tiling above, so it is intentionally not used.
    out_specs = pl.BlockSpec((TB, 1), lambda i: (i, 0))

    flops = int(2 * B * (D_in * H + L_pad * K * H * H + 2 * H))
    bytes_accessed = int(4 * B * D_in + 2 * B * L_pad * H
                         + 2 * K * H * H + 4 * (D_in * H + 3 * H + 1) + 4 * B)
    cost = pl.CostEstimate(flops=flops, transcendentals=int(B),
                           bytes_accessed=bytes_accessed)

    kernel = functools.partial(deepphylo_kernel, used=used,
                               roll_numpy_like=_roll_is_numpy_like())

    # TODO(synk): for production L, add an "arbitrary" sequence-chunk grid axis with a
    # (TB, H) running-max scratch (init / finalize via pl.when) so VMEM is O(chunk), not O(L).
    return pl.pallas_call(
        kernel,
        out_shape=jax.ShapeDtypeStruct((B, 1), jnp.float32),
        grid=grid,
        in_specs=in_specs,
        out_specs=out_specs,
        compiler_params=pltpu.CompilerParams(
            dimension_semantics=("parallel",),
            vmem_limit_bytes=vmem_limit),
        cost_estimate=cost,
    )(*args)


def reference_forward(x, ids, params, w_conv_torch):
    """Pure-JAX f32 reference matching the PyTorch forward (eval mode)."""
    x_ab = jax.nn.relu(x @ params["w_ab"] + params["b_ab"])
    emb = params["embedding"][ids]
    phy = emb @ params["w_phy"] + params["b_phy"]            # (B, L, H)
    phy_t = jnp.transpose(phy, (0, 2, 1))                    # (B, H, L)
    conv = jax.lax.conv_general_dilated(
        phy_t, w_conv_torch, window_strides=(1,), padding="VALID",
        dimension_numbers=("NCH", "OIH", "NCH"))
    conv = conv + params["b_conv"][0][:, None]
    conv = ((conv - params["bn_m"][0][:, None])
            / jnp.sqrt(params["bn_v"][0][:, None] + BN_EPS)
            * params["bn_g"][0][:, None] + params["bn_b"][0][:, None])
    conv = jax.nn.relu(conv)
    B, H, Lp = conv.shape
    used = POOL * (Lp // POOL)
    pooled = conv[:, :, :used].reshape(B, H, used // POOL, POOL).max(axis=-1)
    x_conv = pooled.max(axis=-1)
    fused = x_ab * x_conv
    return jax.nn.sigmoid(fused @ params["w_pred"] + params["b_pred"])


if __name__ == "__main__":
    # Small shapes consistent with the module (L chosen so both the sequence-pad
    # path (L % 8 != 0) and the pool-tail mask (Lp % POOL != 0) are exercised).
    B, D_in, E, H, L = 2, 64, 16, 32, 17
    V = D_in + 1                                   # embedding rows; input_size = V - 1
    K = KERNEL_CONV

    key = jax.random.PRNGKey(0)
    ks = jax.random.split(key, 12)

    def uni(k, shape, fan_in):
        b = 1.0 / math.sqrt(fan_in)
        return jax.random.uniform(k, shape, jnp.float32, -b, b)

    embedding = jax.random.normal(ks[0], (V, E), jnp.float32)
    w_conv_torch = uni(ks[5], (H, H, K), H * K)    # PyTorch Conv1d layout (O, I, K)

    params = {
        "embedding": embedding,
        "w_ab": uni(ks[1], (D_in, H), D_in),
        "b_ab": uni(ks[2], (1, H), D_in),
        "w_phy": uni(ks[3], (E, H), E),
        "b_phy": uni(ks[4], (1, H), E),
        "w_conv": jnp.transpose(w_conv_torch, (2, 1, 0)),   # (K, H_in, H_out)
        "b_conv": uni(ks[6], (1, H), H * K),
        "bn_g": jnp.ones((1, H), jnp.float32),
        "bn_b": jnp.zeros((1, H), jnp.float32),
        "bn_m": jnp.zeros((1, H), jnp.float32),
        "bn_v": jnp.ones((1, H), jnp.float32),
        "w_pred": uni(ks[7], (H, 1), H),
        "b_pred": uni(ks[8], (1, 1), H),
    }

    x = jax.random.normal(ks[9], (B, D_in), jnp.float32)
    ids = jax.random.randint(ks[10], (B, L), 0, V, jnp.int32)

    out = jax.block_until_ready(deepphylo_forward(x, ids, params))
    ref = jax.block_until_ready(reference_forward(x, ids, params, w_conv_torch))

    assert out.shape == (B, 1), out.shape
    # bf16 conv-path operands (f32 accumulation) -> relaxed tolerance vs. the f32 reference.
    assert jnp.allclose(out, ref, atol=2e-2, rtol=2e-2), (out, ref)
    print("KERNEL_OK")
</pallas_src>

<mosaic_0001>
module attributes {stable_mosaic.version = 11 : i64} {
  func.func @_probe(%arg0: memref<8x128xf32, #tpu.memory_space<vmem>>, %arg1: memref<8x128xf32, #tpu.memory_space<vmem>>) attributes {dimension_semantics = [], scalar_prefetch = 0 : i64, scratch_operands = 0 : i64, tpu.core_type = #tpu.core_type<tc>} {
    %c0 = arith.constant 0 : index
    %c0_0 = arith.constant 0 : index
    %0 = vector.load %arg0[%c0, %c0_0] : memref<8x128xf32, #tpu.memory_space<vmem>>, vector<8x128xf32>
    %c1_i32 = arith.constant 1 : i32
    %1 = tpu.dynamic_rotate %0 by %c1_i32 dim 0 : vector<8x128xf32>, i32 -> vector<8x128xf32>
    %c0_1 = arith.constant 0 : index
    %c0_2 = arith.constant 0 : index
    %2 = vector.load %arg1[%c0_1, %c0_2] : memref<8x128xf32, #tpu.memory_space<vmem>>, vector<8x128xf32>
    tpu.vector_store %arg1[%c0_1, %c0_2], %1 {strides = array<i32>} : memref<8x128xf32, #tpu.memory_space<vmem>>, vector<8x128xf32>,
    return
  }
}

module attributes {stable_mosaic.version = 11 : i64} {
  func.func @deepphylo_kernel(%arg0: i32, %arg1: memref<2x64xf32, #tpu.memory_space<vmem>>, %arg2: memref<2x24x32xbf16, #tpu.memory_space<vmem>>, %arg3: memref<64x32xf32, #tpu.memory_space<vmem>>, %arg4: memref<1x32xf32, #tpu.memory_space<vmem>>, %arg5: memref<7x32x32xbf16, #tpu.memory_space<vmem>>, %arg6: memref<1x32xf32, #tpu.memory_space<vmem>>, %arg7: memref<1x32xf32, #tpu.memory_space<vmem>>, %arg8: memref<1x1xf32, #tpu.memory_space<smem>>, %arg9: memref<2x1xf32, #tpu.memory_space<vmem>>) attributes {dimension_semantics = [#tpu.dimension_semantics<parallel>], iteration_bounds = array<i64: 1>, scalar_prefetch = 0 : i64, scratch_operands = 0 : i64, tpu.core_type = #tpu.core_type<tc>, window_params = [{transform_indices = @transform_0, window_bounds = array<i64: 2, 64>}, {transform_indices = @transform_1, window_bounds = array<i64: 2, 24, 32>}, {pipeline_mode = #tpu.pipeline_mode<synchronous>, transform_indices = @transform_2, window_bounds = array<i64: 64, 32>}, {pipeline_mode = #tpu.pipeline_mode<synchronous>, transform_indices = @transform_3, window_bounds = array<i64: 1, 32>}, {pipeline_mode = #tpu.pipeline_mode<synchronous>, transform_indices = @transform_4, window_bounds = array<i64: 7, 32, 32>}, {pipeline_mode = #tpu.pipeline_mode<synchronous>, transform_indices = @transform_5, window_bounds = array<i64: 1, 32>}, {pipeline_mode = #tpu.pipeline_mode<synchronous>, transform_indices = @transform_6, window_bounds = array<i64: 1, 32>}, {transform_indices = @transform_7, window_bounds = array<i64: 1, 1>}, {transform_indices = @transform_8, window_bounds = array<i64: 2, 1>}]} {
    %c0 = arith.constant 0 : index
    %c0_0 = arith.constant 0 : index
    %0 = vector.load %arg1[%c0, %c0_0] : memref<2x64xf32, #tpu.memory_space<vmem>>, vector<2x64xf32>
    %c0_1 = arith.constant 0 : index
    %c0_2 = arith.constant 0 : index
    %1 = vector.load %arg3[%c0_1, %c0_2] : memref<64x32xf32, #tpu.memory_space<vmem>>, vector<64x32xf32>
    %cst = arith.constant dense<0.000000e+00> : vector<2x32xf32>
    %2 = tpu.matmul %0, %1, %cst {dimension_numbers = #tpu.dot_dimension_numbers<[1], [0], [0], [1], [0, 0, 1, 1], [], []>} : vector<2x64xf32>, vector<64x32xf32>, vector<2x32xf32> -> vector<2x32xf32>
    %c0_3 = arith.constant 0 : index
    %c0_4 = arith.constant 0 : index
    %3 = vector.load %arg4[%c0_3, %c0_4] : memref<1x32xf32, #tpu.memory_space<vmem>>, vector<1x32xf32>
    %4 = vector.broadcast %3 : vector<1x32xf32> to vector<2x32xf32>
    %5 = arith.addf %2, %4 : vector<2x32xf32>
    %cst_5 = arith.constant 0.000000e+00 : f32
    %6 = vector.broadcast %cst_5 : f32 to vector<2x32xf32>
    %7 = arith.maximumf %5, %6 : vector<2x32xf32>
    %c0_6 = arith.constant 0 : index
    %c0_7 = arith.constant 0 : index
    %c0_8 = arith.constant 0 : index
    %8 = vector.load %arg2[%c0_6, %c0_7, %c0_8] : memref<2x24x32xbf16, #tpu.memory_space<vmem>>, vector<2x24x32xbf16>
    %9 = vector.shape_cast %8 : vector<2x24x32xbf16> to vector<48x32xbf16>
    %c0_9 = arith.constant 0 : index
    %c0_10 = arith.constant 0 : index
    %c0_11 = arith.constant 0 : index
    %10 = vector.load %arg5[%c0_9, %c0_10, %c0_11] : memref<7x32x32xbf16, #tpu.memory_space<vmem>>, vector<1x32x32xbf16>
    %11 = vector.shape_cast %10 : vector<1x32x32xbf16> to vector<32x32xbf16>
    %cst_12 = arith.constant dense<0.000000e+00> : vector<48x32xf32>
    %12 = tpu.matmul %9, %11, %cst_12 {dimension_numbers = #tpu.dot_dimension_numbers<[1], [0], [0], [1], [0, 0, 1, 1], [], []>} : vector<48x32xbf16>, vector<32x32xbf16>, vector<48x32xf32> -> vector<48x32xf32>
    %c1 = arith.constant 1 : index
    %c0_13 = arith.constant 0 : index
    %c0_14 = arith.constant 0 : index
    %13 = vector.load %arg5[%c1, %c0_13, %c0_14] : memref<7x32x32xbf16, #tpu.memory_space<vmem>>, vector<1x32x32xbf16>
    %14 = vector.shape_cast %13 : vector<1x32x32xbf16> to vector<32x32xbf16>
    %cst_15 = arith.constant dense<0.000000e+00> : vector<48x32xf32>
    %15 = tpu.matmul %9, %14, %cst_15 {dimension_numbers = #tpu.dot_dimension_numbers<[1], [0], [0], [1], [0, 0, 1, 1], [], []>} : vector<48x32xbf16>, vector<32x32xbf16>, vector<48x32xf32> -> vector<48x32xf32>
    %c47_i32 = arith.constant 47 : i32
    %16 = tpu.dynamic_rotate %15 by %c47_i32 dim 0 : vector<48x32xf32>, i32 -> vector<48x32xf32>
    %17 = arith.addf %12, %16 : vector<48x32xf32>
    %c2 = arith.constant 2 : index
    %c0_16 = arith.constant 0 : index
    %c0_17 = arith.constant 0 : index
    %18 = vector.load %arg5[%c2, %c0_16, %c0_17] : memref<7x32x32xbf16, #tpu.memory_space<vmem>>, vector<1x32x32xbf16>
    %19 = vector.shape_cast %18 : vector<1x32x32xbf16> to vector<32x32xbf16>
    %cst_18 = arith.constant dense<0.000000e+00> : vector<48x32xf32>
    %20 = tpu.matmul %9, %19, %cst_18 {dimension_numbers = #tpu.dot_dimension_numbers<[1], [0], [0], [1], [0, 0, 1, 1], [], []>} : vector<48x32xbf16>, vector<32x32xbf16>, vector<48x32xf32> -> vector<48x32xf32>
    %c46_i32 = arith.constant 46 : i32
    %21 = tpu.dynamic_rotate %20 by %c46_i32 dim 0 : vector<48x32xf32>, i32 -> vector<48x32xf32>
    %22 = arith.addf %17, %21 : vector<48x32xf32>
    %c3 = arith.constant 3 : index
    %c0_19 = arith.constant 0 : index
    %c0_20 = arith.constant 0 : index
    %23 = vector.load %arg5[%c3, %c0_19, %c0_20] : memref<7x32x32xbf16, #tpu.memory_space<vmem>>, vector<1x32x32xbf16>
    %24 = vector.shape_cast %23 : vector<1x32x32xbf16> to vector<32x32xbf16>
    %cst_21 = arith.constant dense<0.000000e+00> : vector<48x32xf32>
    %25 = tpu.matmul %9, %24, %cst_21 {dimension_numbers = #tpu.dot_dimension_numbers<[1], [0], [0], [1], [0, 0, 1, 1], [], []>} : vector<48x32xbf16>, vector<32x32xbf16>, vector<48x32xf32> -> vector<48x32xf32>
    %c45_i32 = arith.constant 45 : i32
    %26 = tpu.dynamic_rotate %25 by %c45_i32 dim 0 : vector<48x32xf32>, i32 -> vector<48x32xf32>
    %27 = arith.addf %22, %26 : vector<48x32xf32>
    %c4 = arith.constant 4 : index
    %c0_22 = arith.constant 0 : index
    %c0_23 = arith.constant 0 : index
    %28 = vector.load %arg5[%c4, %c0_22, %c0_23] : memref<7x32x32xbf16, #tpu.memory_space<vmem>>, vector<1x32x32xbf16>
    %29 = vector.shape_cast %28 : vector<1x32x32xbf16> to vector<32x32xbf16>
    %cst_24 = arith.constant dense<0.000000e+00> : vector<48x32xf32>
    %30 = tpu.matmul %9, %29, %cst_24 {dimension_numbers = #tpu.dot_dimension_numbers<[1], [0], [0], [1], [0, 0, 1, 1], [], []>} : vector<48x32xbf16>, vector<32x32xbf16>, vector<48x32xf32> -> vector<48x32xf32>
    %c44_i32 = arith.constant 44 : i32
    %31 = tpu.dynamic_rotate %30 by %c44_i32 dim 0 : vector<48x32xf32>, i32 -> vector<48x32xf32>
    %32 = arith.addf %27, %31 : vector<48x32xf32>
    %c5 = arith.constant 5 : index
    %c0_25 = arith.constant 0 : index
    %c0_26 = arith.constant 0 : index
    %33 = vector.load %arg5[%c5, %c0_25, %c0_26] : memref<7x32x32xbf16, #tpu.memory_space<vmem>>, vector<1x32x32xbf16>
    %34 = vector.shape_cast %33 : vector<1x32x32xbf16> to vector<32x32xbf16>
    %cst_27 = arith.constant dense<0.000000e+00> : vector<48x32xf32>
    %35 = tpu.matmul %9, %34, %cst_27 {dimension_numbers = #tpu.dot_dimension_numbers<[1], [0], [0], [1], [0, 0, 1, 1], [], []>} : vector<48x32xbf16>, vector<32x32xbf16>, vector<48x32xf32> -> vector<48x32xf32>
    %c43_i32 = arith.constant 43 : i32
    %36 = tpu.dynamic_rotate %35 by %c43_i32 dim 0 : vector<48x32xf32>, i32 -> vector<48x32xf32>
    %37 = arith.addf %32, %36 : vector<48x32xf32>
    %c6 = arith.constant 6 : index
    %c0_28 = arith.constant 0 : index
    %c0_29 = arith.constant 0 : index
    %38 = vector.load %arg5[%c6, %c0_28, %c0_29] : memref<7x32x32xbf16, #tpu.memory_space<vmem>>, vector<1x32x32xbf16>
    %39 = vector.shape_cast %38 : vector<1x32x32xbf16> to vector<32x32xbf16>
    %cst_30 = arith.constant dense<0.000000e+00> : vector<48x32xf32>
    %40 = tpu.matmul %9, %39, %cst_30 {dimension_numbers = #tpu.dot_dimension_numbers<[1], [0], [0], [1], [0, 0, 1, 1], [], []>} : vector<48x32xbf16>, vector<32x32xbf16>, vector<48x32xf32> -> vector<48x32xf32>
    %c42_i32 = arith.constant 42 : i32
    %41 = tpu.dynamic_rotate %40 by %c42_i32 dim 0 : vector<48x32xf32>, i32 -> vector<48x32xf32>
    %42 = arith.addf %37, %41 : vector<48x32xf32>
    %c0_31 = arith.constant 0 : index
    %c0_32 = arith.constant 0 : index
    %43 = vector.load %arg6[%c0_31, %c0_32] : memref<1x32xf32, #tpu.memory_space<vmem>>, vector<1x32xf32>
    %44 = vector.broadcast %43 : vector<1x32xf32> to vector<48x32xf32>
    %45 = arith.addf %42, %44 : vector<48x32xf32>
    %cst_33 = arith.constant 0.000000e+00 : f32
    %46 = vector.broadcast %cst_33 : f32 to vector<48x32xf32>
    %47 = arith.maximumf %45, %46 : vector<48x32xf32>
    %48 = vector.shape_cast %47 : vector<48x32xf32> to vector<2x24x32xf32>
    %49 = tpu.iota {dimensions = array<i32: 1>} : vector<2x24x32xi32>
    %c8_i32 = arith.constant 8 : i32
    %50 = vector.broadcast %c8_i32 : i32 to vector<2x24x32xi32>
    %51 = arith.cmpi slt, %49, %50 : vector<2x24x32xi32>
    %cst_34 = arith.constant 0.000000e+00 : f32
    %52 = vector.broadcast %cst_34 : f32 to vector<2x24x32xf32>
    %53 = arith.select %51, %48, %52 : vector<2x24x32xi1>, vector<2x24x32xf32>
    %cst_35 = arith.constant dense<0xFF800000> : vector<2x32xf32>
    %54 = vector.multi_reduction <maximumf>, %53, %cst_35 [1] : vector<2x24x32xf32> to vector<2x32xf32>
    %55 = arith.mulf %7, %54 : vector<2x32xf32>
    %c0_36 = arith.constant 0 : index
    %c0_37 = arith.constant 0 : index
    %56 = vector.load %arg7[%c0_36, %c0_37] : memref<1x32xf32, #tpu.memory_space<vmem>>, vector<1x32xf32>
    %57 = vector.broadcast %56 : vector<1x32xf32> to vector<2x32xf32>
    %58 = arith.mulf %55, %57 : vector<2x32xf32>
    %cst_38 = arith.constant dense<0.000000e+00> : vector<2xf32>
    %59 = vector.multi_reduction <add>, %58, %cst_38 [1] : vector<2x32xf32> to vector<2xf32>
    %60 = vector.shape_cast %59 : vector<2xf32> to vector<2x1xf32>
    %c0_39 = arith.constant 0 : index
    %c0_40 = arith.constant 0 : index
    %61 = memref.load %arg8[%c0_39, %c0_40] : memref<1x1xf32, #tpu.memory_space<smem>>
    %62 = vector.broadcast %61 : f32 to vector<2x1xf32>
    %63 = arith.addf %60, %62 : vector<2x1xf32>
    %64 = arith.negf %63 : vector<2x1xf32>
    %65 = math.exp %64 : vector<2x1xf32>
    %cst_41 = arith.constant 1.000000e+00 : f32
    %66 = vector.broadcast %cst_41 : f32 to vector<2x1xf32>
    %67 = arith.addf %66, %65 : vector<2x1xf32>
    %68 = arith.divf %66, %67 : vector<2x1xf32>
    %c0_42 = arith.constant 0 : index
    %c0_43 = arith.constant 0 : index
    %69 = vector.load %arg9[%c0_42, %c0_43] : memref<2x1xf32, #tpu.memory_space<vmem>>, vector<2x1xf32>
    tpu.vector_store %arg9[%c0_42, %c0_43], %68 {strides = array<i32>} : memref<2x1xf32, #tpu.memory_space<vmem>>, vector<2x1xf32>,
    return
  }
  func.func @transform_0(%arg0: i32) -> (i32, i32) {
    %c0_i32 = arith.constant 0 : i32
    %c0_i32_0 = arith.constant 0 : i32
    return %arg0, %c0_i32 : i32, i32
  }
  func.func @transform_1(%arg0: i32) -> (i32, i32, i32) {
    %c0_i32 = arith.constant 0 : i32
    %c0_i32_0 = arith.constant 0 : i32
    %c0_i32_1 = arith.constant 0 : i32
    return %arg0, %c0_i32, %c0_i32_0 : i32, i32, i32
  }
  func.func @transform_2(%arg0: i32) -> (i32, i32) {
    %c0_i32 = arith.constant 0 : i32
    %c0_i32_0 = arith.constant 0 : i32
    %c0_i32_1 = arith.constant 0 : i32
    return %c0_i32, %c0_i32_0 : i32, i32
  }
  func.func @transform_3(%arg0: i32) -> (i32, i32) {
    %c0_i32 = arith.constant 0 : i32
    %c0_i32_0 = arith.constant 0 : i32
    %c0_i32_1 = arith.constant 0 : i32
    return %c0_i32, %c0_i32_0 : i32, i32
  }
  func.func @transform_4(%arg0: i32) -> (i32, i32, i32) {
    %c0_i32 = arith.constant 0 : i32
    %c0_i32_0 = arith.constant 0 : i32
    %c0_i32_1 = arith.constant 0 : i32
    %c0_i32_2 = arith.constant 0 : i32
    return %c0_i32, %c0_i32_0, %c0_i32_1 : i32, i32, i32
  }
  func.func @transform_5(%arg0: i32) -> (i32, i32) {
    %c0_i32 = arith.constant 0 : i32
    %c0_i32_0 = arith.constant 0 : i32
    %c0_i32_1 = arith.constant 0 : i32
    return %c0_i32, %c0_i32_0 : i32, i32
  }
  func.func @transform_6(%arg0: i32) -> (i32, i32) {
    %c0_i32 = arith.constant 0 : i32
    %c0_i32_0 = arith.constant 0 : i32
    %c0_i32_1 = arith.constant 0 : i32
    return %c0_i32, %c0_i32_0 : i32, i32
  }
  func.func @transform_7(%arg0: i32) -> (i32, i32) {
    %c0_i32 = arith.constant 0 : i32
    %c0_i32_0 = arith.constant 0 : i32
    %c0_i32_1 = arith.constant 0 : i32
    return %c0_i32, %c0_i32_0 : i32, i32
  }
  func.func @transform_8(%arg0: i32) -> (i32, i32) {
    %c0_i32 = arith.constant 0 : i32
    %c0_i32_0 = arith.constant 0 : i32
    return %arg0, %c0_i32 : i32, i32
  }
}

</mosaic_0001>

<llo_original>
// kernel: tpu_custom_call.1
$region0: #{tpu_custom_call.1}
  #allocation0 [shape = 'u32[]', space=smem, size = 0x4, offset = 0x4, fixed_abs, tag = 'smem constant byte address 0x4 - core index']
  #allocation1 [shape = 'u32[72,128]{1,0:T(1,128)}', space=vmem, size = 0x9000, scoped, tag = 'internal scratch']
  %s0 = inlined_call_operand.hbm [shape: f32[8,128], index: 0, kind: input, shape index: {}]
  %s1 = inlined_call_operand.hbm [shape: f32[8,128], index: 1, kind: output, shape index: {}]
  %s2 = sld [smem:[#allocation0]]
  $region18: #{tpu_custom_call.1} parent=0
    _
  %s4 = ssub.s32 1, %s2
  %s5 = scalar_select 0, %s4, %s2
  $region1: #{tpu_custom_call.1} parent=0
    #allocation2 [shape = 'u8[4096]{0}', space=vmem, size = 0x1000, scoped, tag = 'input window, operand 0, single buffered']
    #allocation3 [shape = 's32[1]{0}', space=sflag, size = 0x4, scoped, tag = 'scoped memory for tpu_custom_call.1']
    #allocation4 [shape = 's32[1]{0}', space=sflag, size = 0x4, scoped, tag = 'scoped memory for tpu_custom_call.1']
    #allocation5 [shape = 'u8[4096]{0}', space=vmem, size = 0x1000, scoped, tag = 'output window, operand 0, single buffered']
    %6 = vsyncpa [#allocation3], 0
    %7 = vsyncpa [#allocation4], 0
    // Predicated region
    $region2: #{tpu_custom_call.1} parent=1 // pred_check
      _
    $region3: #{tpu_custom_call.1} parent=1 // pred_check_branch
      %9 = sbr.rel (0) target = $region5
    $region4: #{tpu_custom_call.1} parent=1 // pred_region
      %11 = vsyncadd [#allocation3], 0
      %s13 = sshll.u32 %s0, 4
      %s14 = int_to_ptr.hbm [resolvable:$true] %s13
      %s15 = sshll.u32 [#allocation2], 4
      %s16 = int_to_ptr.vmem [resolvable:$true] %s15
      %18 = dma.hbm_to_vmem [thread:$0]  %s14, 128, %s16, [#allocation3]
    $region5: #{tpu_custom_call.1} parent=1 // pred_fallthru
      _
    // Predicated region
    $region6: #{tpu_custom_call.1} parent=1 // pred_check
      _
    $region7: #{tpu_custom_call.1} parent=1 // pred_check_branch
      %20 = sbr.rel (0) target = $region9
    $region8: #{tpu_custom_call.1} parent=1 // pred_region
      %22 = dma.done [#allocation3], 128
    $region9: #{tpu_custom_call.1} parent=1 // pred_fallthru
      _
    %v23 = vld [vmem:[#allocation2] sm:$0xff]
    %v24 = vrot.slane %v23, 7
    %25 = vst [vmem:[#allocation5] sm:$0xff] %v24
    // Predicated region
    $region10: #{tpu_custom_call.1} parent=1 // pred_check
      _
    $region11: #{tpu_custom_call.1} parent=1 // pred_check_branch
      %27 = sbr.rel (0) target = $region13
    $region12: #{tpu_custom_call.1} parent=1 // pred_region
      %29 = vsyncadd [#allocation4], 0
      %s31 = sshll.u32 [#allocation5], 4
      %s32 = int_to_ptr.vmem [resolvable:$true] %s31
      %s33 = sshll.u32 %s1, 4
      %s34 = int_to_ptr.hbm [resolvable:$true] %s33
      %36 = dma.vmem_to_hbm [thread:$0]  %s32, 128, %s34, [#allocation4]
    $region13: #{tpu_custom_call.1} parent=1 // pred_fallthru
      _
    // Predicated region
    $region14: #{tpu_custom_call.1} parent=1 // pred_check
      _
    $region15: #{tpu_custom_call.1} parent=1 // pred_check_branch
      %38 = sbr.rel (0) target = $region17
    $region16: #{tpu_custom_call.1} parent=1 // pred_region
      %40 = dma.done [#allocation4], 128
    $region17: #{tpu_custom_call.1} parent=1 // pred_fallthru
      _
    %41 = vsyncpa [#allocation3], 1
    %42 = vsyncpa [#allocation4], 1

// kernel: tpu_custom_call.1
$region0: #{tpu_custom_call.1}
  #allocation0 [shape = 'u32[]', space=smem, size = 0x4, offset = 0x4, fixed_abs, tag = 'smem constant byte address 0x4 - core index']
  #allocation1 [shape = 'u32[72,128]{1,0:T(1,128)}', space=vmem, size = 0x9000, scoped, tag = 'internal scratch']
  #allocation2 [shape = 'f32[1,1]{1,0:T(1,128)S(6)}', space=smem, size = 0x200, scoped, tag = 'scoped memory for tpu_custom_call.1']
  %s0 = inlined_call_operand.vmem [shape: f32[2,64], index: 0, kind: input, shape index: {}]
  %s1 = inlined_call_operand.vmem [shape: bf16[2,24,32], index: 1, kind: input, shape index: {}]
  %s2 = inlined_call_operand.vmem [shape: f32[64,32], index: 2, kind: input, shape index: {}]
  %s3 = inlined_call_operand.vmem [shape: f32[1,32], index: 3, kind: input, shape index: {}]
  %s4 = inlined_call_operand.hbm [shape: bf16[7,32,32], index: 4, kind: input, shape index: {}]
  %s5 = inlined_call_operand.vmem [shape: f32[1,32], index: 5, kind: input, shape index: {}]
  %s6 = inlined_call_operand.vmem [shape: f32[1,32], index: 6, kind: input, shape index: {}]
  %s7 = inlined_call_operand.<no memory space> [shape: f32[1,1], index: 7, kind: input, shape index: {}]
  %s8 = inlined_call_operand.vmem [shape: f32[2,1], index: 8, kind: output, shape index: {}]
  %s9 = sld [smem:[#allocation0]]
  $region46: #{tpu_custom_call.1} parent=0
    _
  %s11 = ssub.s32 1, %s9
  %s12 = scalar_select 0, %s11, %s9
  %13 = sst [smem:[#allocation2]] %s7
  $region1: #{tpu_custom_call.1} parent=0
    #allocation3 [shape = 'u8[57344]{0}', space=vmem, size = 0xe000, scoped, tag = 'input window, operand 4, single buffered']
    #allocation4 [shape = 's32[1]{0}', space=sflag, size = 0x4, scoped, tag = 'scoped memory for tpu_custom_call.1']
    %14 = vsyncpa [#allocation4], 0
    // Predicated region
    $region2: #{tpu_custom_call.1} parent=1 // pred_check
      _
    $region3: #{tpu_custom_call.1} parent=1 // pred_check_branch
      %16 = sbr.rel (0) target = $region5
    $region4: #{tpu_custom_call.1} parent=1 // pred_region
      _
    $region5: #{tpu_custom_call.1} parent=1 // pred_fallthru
      _
    // Predicated region
    $region6: #{tpu_custom_call.1} parent=1 // pred_check
      _
    $region7: #{tpu_custom_call.1} parent=1 // pred_check_branch
      %18 = sbr.rel (0) target = $region9
    $region8: #{tpu_custom_call.1} parent=1 // pred_region
      _
    $region9: #{tpu_custom_call.1} parent=1 // pred_fallthru
      _
    // Predicated region
    $region10: #{tpu_custom_call.1} parent=1 // pred_check
      _
    $region11: #{tpu_custom_call.1} parent=1 // pred_check_branch
      %20 = sbr.rel (0) target = $region13
    $region12: #{tpu_custom_call.1} parent=1 // pred_region
      _
    $region13: #{tpu_custom_call.1} parent=1 // pred_fallthru
      _
    // Predicated region
    $region14: #{tpu_custom_call.1} parent=1 // pred_check
      _
    $region15: #{tpu_custom_call.1} parent=1 // pred_check_branch
      %22 = sbr.rel (0) target = $region17
    $region16: #{tpu_custom_call.1} parent=1 // pred_region
      _
    $region17: #{tpu_custom_call.1} parent=1 // pred_fallthru
      _
    // Predicated region
    $region18: #{tpu_custom_call.1} parent=1 // pred_check
      _
    $region19: #{tpu_custom_call.1} parent=1 // pred_check_branch
      %24 = sbr.rel (0) target = $region21
    $region20: #{tpu_custom_call.1} parent=1 // pred_region
      %26 = vsyncadd [#allocation4], 0
      %s27 = sshll.u32 %s4, 4
      %s28 = int_to_ptr.hbm [resolvable:$true] %s27
      %s29 = sshll.u32 [#allocation3], 4
      %s30 = int_to_ptr.vmem [resolvable:$true] %s29
      %35 = dma.hbm_to_vmem [thread:$0]  %s28, 1792, %s30, [#allocation4], 64, 64, 4
    $region21: #{tpu_custom_call.1} parent=1 // pred_fallthru
      _
    // Predicated region
    $region22: #{tpu_custom_call.1} parent=1 // pred_check
      _
    $region23: #{tpu_custom_call.1} parent=1 // pred_check_branch
      %37 = sbr.rel (0) target = $region25
    $region24: #{tpu_custom_call.1} parent=1 // pred_region
      _
    $region25: #{tpu_custom_call.1} parent=1 // pred_fallthru
      _
    // Predicated region
    $region26: #{tpu_custom_call.1} parent=1 // pred_check
      _
    $region27: #{tpu_custom_call.1} parent=1 // pred_check_branch
      %39 = sbr.rel (0) target = $region29
    $region28: #{tpu_custom_call.1} parent=1 // pred_region
      _
    $region29: #{tpu_custom_call.1} parent=1 // pred_fallthru
      _
    // Predicated region
    $region30: #{tpu_custom_call.1} parent=1 // pred_check
      _
    $region31: #{tpu_custom_call.1} parent=1 // pred_check_branch
      %41 = sbr.rel (0) target = $region33
    $region32: #{tpu_custom_call.1} parent=1 // pred_region
      _
    $region33: #{tpu_custom_call.1} parent=1 // pred_fallthru
      _
    // Predicated region
    $region34: #{tpu_custom_call.1} parent=1 // pred_check
      _
    $region35: #{tpu_custom_call.1} parent=1 // pred_check_branch
      %43 = sbr.rel (0) target = $region37
    $region36: #{tpu_custom_call.1} parent=1 // pred_region
      %45 = dma.done [#allocation4], 1792
    $region37: #{tpu_custom_call.1} parent=1 // pred_fallthru
      _
    %v47 = vld [vmem:[%s0] sm:$0x3]
    %v48 = vld [vmem:[%s2] sm:$0xff]
    %v49 = vld [vmem:[%s2 + $0x8] sm:$0xff]
    %v50 = vld [vmem:[%s2 + $0x10] sm:$0xff]
    %v51 = vld [vmem:[%s2 + $0x18] sm:$0xff]
    %v52 = vld [vmem:[%s2 + $0x20] sm:$0xff]
    %v53 = vld [vmem:[%s2 + $0x28] sm:$0xff]
    %v54 = vld [vmem:[%s2 + $0x30] sm:$0xff]
    %v55 = vld [vmem:[%s2 + $0x38] sm:$0xff]
    %v56 = vld [vmem:[%s3] sm:$0x1]
    %v58 = vperm.slane %v56, 0
    %vm60 = vcmask 523264
    %v62 = vsel %vm60, %v47, 0
    %64 = vmatpush.msra.mxu0 0.0
    %65 = vmatpush.msra.mxu0 0.0
    %66 = vmatpush.msra.mxu0 0.0
    %67 = vmatpush.msra.mxu0 0.0
    %68 = vmatpush.msra.mxu0 0.0
    %69 = vmatpush.msra.mxu0 0.0
    %70 = vmatpush.msra.mxu0 0.0
    %71 = vmatpush.msra.mxu0 0.0
    %72 = vmatpush.msra.mxu0 %v55
    %73 = vmatpush.msra.mxu0 %v54
    %74 = vmatpush.msra.mxu0 %v53
    %75 = vmatpush.msra.mxu0 %v52
    %76 = vmatpush.msra.mxu0 %v51
    %77 = vmatpush.msra.mxu0 %v50
    %78 = vmatpush.msra.mxu0 %v49
    %79 = vmatpush.msra.mxu0 %v48
    %80 = vmatmul.f32.gmra.mxu0 %v62
    %v81 = vpop.f32.mrf.mxu0
    %v82 = vadd.f32 %v58, %v81
    %83 = vdwg.mxu0
    %v84 = vmax.f32 %v82, 0.0
    %v85 = vld [vmem:[%s1] sm:$0xf]
    %v86 = vld [vmem:[%s1 + $0x4] sm:$0xf]
    %v87 = vld [vmem:[%s1 + $0x8] sm:$0xf]
    %v88 = vld [vmem:[%s1 + $0xc] sm:$0xf]
    %v89 = vld [vmem:[%s1 + $0x10] sm:$0xf]
    %v90 = vld [vmem:[%s1 + $0x14] sm:$0xf]
    %v91 = vld [vmem:[#allocation3] sm:$0xf]
    %v92 = vld [vmem:[#allocation3 + $0x4] sm:$0xf]
    %v93 = vld [vmem:[#allocation3 + $0x8] sm:$0xf]
    %v94 = vld [vmem:[#allocation3 + $0xc] sm:$0xf]
    %s95 = scalar_lea.vmem [#allocation3], 16
    %v96 = vld [vmem:[%s95] sm:$0xf]
    %v97 = vld [vmem:[%s95 + $0x4] sm:$0xf]
    %v98 = vld [vmem:[%s95 + $0x8] sm:$0xf]
    %v99 = vld [vmem:[%s95 + $0xc] sm:$0xf]
    %v106 = vunpack.c.l.b16 %v85
    %v107 = vunpack.c.l.b16 %v86
    %v108 = vunpack.c.l.b16 %v87
    %v109 = vunpack.c.l.b16 %v88
    %v110 = vunpack.c.l.b16 %v89
    %v111 = vunpack.c.l.b16 %v90
    %v112 = vpack.c.b16 %v107, %v106
    %v113 = vpack.c.b16 %v109, %v108
    %v114 = vpack.c.b16 %v111, %v110
    %v119 = vunpack.c.l.b16 %v96
    %v120 = vunpack.c.l.b16 %v97
    %v121 = vunpack.c.l.b16 %v98
    %v122 = vunpack.c.l.b16 %v99
    %v123 = vpack.c.b16 %v120, %v119
    %v124 = vpack.c.b16 %v122, %v121
    %vm127 = vcmask 261120
    %v129 = vsel %vm127, %v112, 0
    %v132 = vsel %vm127, %v113, 0
    %v135 = vsel %vm127, %v114, 0
    %137 = vmatpush.bf16.msra.mxu0 0
    %138 = vmatpush.bf16.msra.mxu0 0
    %139 = vmatpush.bf16.msra.mxu0 0
    %140 = vmatpush.bf16.msra.mxu0 0
    %141 = vmatpush.bf16.msra.mxu0 0
    %142 = vmatpush.bf16.msra.mxu0 0
    %143 = vmatpush.bf16.msra.mxu0 %v124
    %144 = vmatpush.bf16.msra.mxu0 %v123
    %145 = vmatmul.bf16.gmra.mxu0 %v129
    %v146 = vpop.f32.mrf.mxu0
    %v147 = vadd.f32 0.0, %v146
    %v148 = vpop.f32.mrf.mxu0
    %v149 = vadd.f32 0.0, %v148
    %150 = vmatmul.bf16.gmra.mxu0 %v132
    %v151 = vpop.f32.mrf.mxu0
    %v152 = vadd.f32 0.0, %v151
    %v153 = vpop.f32.mrf.mxu0
    %v154 = vadd.f32 0.0, %v153
    %155 = vmatmul.bf16.gmra.mxu0 %v135
    %v156 = vpop.f32.mrf.mxu0
    %v157 = vadd.f32 0.0, %v156
    %v158 = vpop.f32.mrf.mxu0
    %v159 = vadd.f32 0.0, %v158
    %160 = vdwg.mxu0
    %v161 = vrot.slane %v147, 1
    %v162 = vrot.slane %v149, 1
    %v163 = vrot.slane %v152, 1
    %v164 = vrot.slane %v154, 1
    %v165 = vrot.slane %v157, 1
    %v166 = vrot.slane %v159, 1
    %v167 = vlaneseq
    %v168 = vshrl.u32 %v167, 7
    %vm169 = vcmp.lt.s32.totalorder %v168, 7
    %v170 = vsel %vm169, %v165, %v166
    %v171 = vsel %vm169, %v164, %v165
    %v172 = vsel %vm169, %v163, %v164
    %v173 = vsel %vm169, %v162, %v163
    %v174 = vsel %vm169, %v161, %v162
    %v175 = vsel %vm169, %v166, %v161
    %v180 = vunpack.c.l.b16 %v91
    %v181 = vunpack.c.l.b16 %v92
    %v182 = vunpack.c.l.b16 %v93
    %v183 = vunpack.c.l.b16 %v94
    %v184 = vpack.c.b16 %v181, %v180
    %v185 = vpack.c.b16 %v183, %v182
    %188 = vmatpush.bf16.msra.mxu0 0
    %189 = vmatpush.bf16.msra.mxu0 0
    %190 = vmatpush.bf16.msra.mxu0 0
    %191 = vmatpush.bf16.msra.mxu0 0
    %192 = vmatpush.bf16.msra.mxu0 0
    %193 = vmatpush.bf16.msra.mxu0 0
    %194 = vmatpush.bf16.msra.mxu0 %v185
    %195 = vmatpush.bf16.msra.mxu0 %v184
    %196 = vmatmul.bf16.gmra.mxu0 %v129
    %v197 = vpop.f32.mrf.mxu0
    %v198 = vadd.f32 %v174, %v197
    %v199 = vpop.f32.mrf.mxu0
    %v200 = vadd.f32 %v173, %v199
    %201 = vmatmul.bf16.gmra.mxu0 %v132
    %v202 = vpop.f32.mrf.mxu0
    %v203 = vadd.f32 %v172, %v202
    %v204 = vpop.f32.mrf.mxu0
    %v205 = vadd.f32 %v171, %v204
    %206 = vmatmul.bf16.gmra.mxu0 %v135
    %v207 = vpop.f32.mrf.mxu0
    %v208 = vadd.f32 %v170, %v207
    %v209 = vpop.f32.mrf.mxu0
    %v210 = vadd.f32 %v175, %v209
    %211 = vdwg.mxu0
    %s212 = scalar_lea.vmem [#allocation3], 32
    %v213 = vld [vmem:[%s212] sm:$0xf]
    %v214 = vld [vmem:[%s212 + $0x4] sm:$0xf]
    %v215 = vld [vmem:[%s212 + $0x8] sm:$0xf]
    %v216 = vld [vmem:[%s212 + $0xc] sm:$0xf]
    %v221 = vunpack.c.l.b16 %v213
    %v222 = vunpack.c.l.b16 %v214
    %v223 = vunpack.c.l.b16 %v215
    %v224 = vunpack.c.l.b16 %v216
    %v225 = vpack.c.b16 %v222, %v221
    %v226 = vpack.c.b16 %v224, %v223
    %229 = vmatpush.bf16.msra.mxu0 0
    %230 = vmatpush.bf16.msra.mxu0 0
    %231 = vmatpush.bf16.msra.mxu0 0
    %232 = vmatpush.bf16.msra.mxu0 0
    %233 = vmatpush.bf16.msra.mxu0 0
    %234 = vmatpush.bf16.msra.mxu0 0
    %235 = vmatpush.bf16.msra.mxu0 %v226
    %236 = vmatpush.bf16.msra.mxu0 %v225
    %237 = vmatmul.bf16.gmra.mxu0 %v129
    %v238 = vpop.f32.mrf.mxu0
    %v239 = vadd.f32 0.0, %v238
    %v240 = vpop.f32.mrf.mxu0
    %v241 = vadd.f32 0.0, %v240
    %242 = vmatmul.bf16.gmra.mxu0 %v132
    %v243 = vpop.f32.mrf.mxu0
    %v244 = vadd.f32 0.0, %v243
    %v245 = vpop.f32.mrf.mxu0
    %v246 = vadd.f32 0.0, %v245
    %247 = vmatmul.bf16.gmra.mxu0 %v135
    %v248 = vpop.f32.mrf.mxu0
    %v249 = vadd.f32 0.0, %v248
    %v250 = vpop.f32.mrf.mxu0
    %v251 = vadd.f32 0.0, %v250
    %252 = vdwg.mxu0
    %v253 = vrot.slane %v239, 2
    %v254 = vrot.slane %v241, 2
    %v255 = vrot.slane %v244, 2
    %v256 = vrot.slane %v246, 2
    %v257 = vrot.slane %v249, 2
    %v258 = vrot.slane %v251, 2
    %vm259 = vcmp.lt.s32.totalorder %v168, 6
    %v260 = vsel %vm259, %v257, %v258
    %v261 = vsel %vm259, %v256, %v257
    %v262 = vsel %vm259, %v255, %v256
    %v263 = vsel %vm259, %v254, %v255
    %v264 = vsel %vm259, %v253, %v254
    %v265 = vsel %vm259, %v258, %v253
    %v266 = vadd.f32 %v198, %v264
    %v267 = vadd.f32 %v200, %v263
    %v268 = vadd.f32 %v203, %v262
    %v269 = vadd.f32 %v205, %v261
    %v270 = vadd.f32 %v208, %v260
    %v271 = vadd.f32 %v210, %v265
    %s272 = scalar_lea.vmem [#allocation3], 48
    %v273 = vld [vmem:[%s272] sm:$0xf]
    %v274 = vld [vmem:[%s272 + $0x4] sm:$0xf]
    %v275 = vld [vmem:[%s272 + $0x8] sm:$0xf]
    %v276 = vld [vmem:[%s272 + $0xc] sm:$0xf]
    %v281 = vunpack.c.l.b16 %v273
    %v282 = vunpack.c.l.b16 %v274
    %v283 = vunpack.c.l.b16 %v275
    %v284 = vunpack.c.l.b16 %v276
    %v285 = vpack.c.b16 %v282, %v281
    %v286 = vpack.c.b16 %v284, %v283
    %289 = vmatpush.bf16.msra.mxu0 0
    %290 = vmatpush.bf16.msra.mxu0 0
    %291 = vmatpush.bf16.msra.mxu0 0
    %292 = vmatpush.bf16.msra.mxu0 0
    %293 = vmatpush.bf16.msra.mxu0 0
    %294 = vmatpush.bf16.msra.mxu0 0
    %295 = vmatpush.bf16.msra.mxu0 %v286
    %296 = vmatpush.bf16.msra.mxu0 %v285
    %297 = vmatmul.bf16.gmra.mxu0 %v129
    %v298 = vpop.f32.mrf.mxu0
    %v299 = vadd.f32 0.0, %v298
    %v300 = vpop.f32.mrf.mxu0
    %v301 = vadd.f32 0.0, %v300
    %302 = vmatmul.bf16.gmra.mxu0 %v132
    %v303 = vpop.f32.mrf.mxu0
    %v304 = vadd.f32 0.0, %v303
    %v305 = vpop.f32.mrf.mxu0
    %v306 = vadd.f32 0.0, %v305
    %307 = vmatmul.bf16.gmra.mxu0 %v135
    %v308 = vpop.f32.mrf.mxu0
    %v309 = vadd.f32 0.0, %v308
    %v310 = vpop.f32.mrf.mxu0
    %v311 = vadd.f32 0.0, %v310
    %312 = vdwg.mxu0
    %v313 = vrot.slane %v299, 3
    %v314 = vrot.slane %v301, 3
    %v315 = vrot.slane %v304, 3
    %v316 = vrot.slane %v306, 3
    %v317 = vrot.slane %v309, 3
    %v318 = vrot.slane %v311, 3
    %vm319 = vcmp.lt.s32.totalorder %v168, 5
    %v320 = vsel %vm319, %v317, %v318
    %v321 = vsel %vm319, %v316, %v317
    %v322 = vsel %vm319, %v315, %v316
    %v323 = vsel %vm319, %v314, %v315
    %v324 = vsel %vm319, %v313, %v314
    %v325 = vsel %vm319, %v318, %v313
    %v326 = vadd.f32 %v266, %v324
    %v327 = vadd.f32 %v267, %v323
    %v328 = vadd.f32 %v268, %v322
    %v329 = vadd.f32 %v269, %v321
    %v330 = vadd.f32 %v270, %v320
    %v331 = vadd.f32 %v271, %v325
    %s332 = scalar_lea.vmem [#allocation3], 64
    %v333 = vld [vmem:[%s332] sm:$0xf]
    %v334 = vld [vmem:[%s332 + $0x4] sm:$0xf]
    %v335 = vld [vmem:[%s332 + $0x8] sm:$0xf]
    %v336 = vld [vmem:[%s332 + $0xc] sm:$0xf]
    %v341 = vunpack.c.l.b16 %v333
    %v342 = vunpack.c.l.b16 %v334
    %v343 = vunpack.c.l.b16 %v335
    %v344 = vunpack.c.l.b16 %v336
    %v345 = vpack.c.b16 %v342, %v341
    %v346 = vpack.c.b16 %v344, %v343
    %349 = vmatpush.bf16.msra.mxu0 0
    %350 = vmatpush.bf16.msra.mxu0 0
    %351 = vmatpush.bf16.msra.mxu0 0
    %352 = vmatpush.bf16.msra.mxu0 0
    %353 = vmatpush.bf16.msra.mxu0 0
    %354 = vmatpush.bf16.msra.mxu0 0
    %355 = vmatpush.bf16.msra.mxu0 %v346
    %356 = vmatpush.bf16.msra.mxu0 %v345
    %357 = vmatmul.bf16.gmra.mxu0 %v129
    %v358 = vpop.f32.mrf.mxu0
    %v359 = vadd.f32 0.0, %v358
    %v360 = vpop.f32.mrf.mxu0
    %v361 = vadd.f32 0.0, %v360
    %362 = vmatmul.bf16.gmra.mxu0 %v132
    %v363 = vpop.f32.mrf.mxu0
    %v364 = vadd.f32 0.0, %v363
    %v365 = vpop.f32.mrf.mxu0
    %v366 = vadd.f32 0.0, %v365
    %367 = vmatmul.bf16.gmra.mxu0 %v135
    %v368 = vpop.f32.mrf.mxu0
    %v369 = vadd.f32 0.0, %v368
    %v370 = vpop.f32.mrf.mxu0
    %v371 = vadd.f32 0.0, %v370
    %372 = vdwg.mxu0
    %v373 = vrot.slane %v359, 4
    %v374 = vrot.slane %v361, 4
    %v375 = vrot.slane %v364, 4
    %v376 = vrot.slane %v366, 4
    %v377 = vrot.slane %v369, 4
    %v378 = vrot.slane %v371, 4
    %vm379 = vcmp.lt.s32.totalorder %v168, 4
    %v380 = vsel %vm379, %v377, %v378
    %v381 = vsel %vm379, %v376, %v377
    %v382 = vsel %vm379, %v375, %v376
    %v383 = vsel %vm379, %v374, %v375
    %v384 = vsel %vm379, %v373, %v374
    %v385 = vsel %vm379, %v378, %v373
    %v386 = vadd.f32 %v326, %v384
    %v387 = vadd.f32 %v327, %v383
    %v388 = vadd.f32 %v328, %v382
    %v389 = vadd.f32 %v329, %v381
    %v390 = vadd.f32 %v330, %v380
    %v391 = vadd.f32 %v331, %v385
    %s392 = scalar_lea.vmem [#allocation3], 80
    %v393 = vld [vmem:[%s392] sm:$0xf]
    %v394 = vld [vmem:[%s392 + $0x4] sm:$0xf]
    %v395 = vld [vmem:[%s392 + $0x8] sm:$0xf]
    %v396 = vld [vmem:[%s392 + $0xc] sm:$0xf]
    %v401 = vunpack.c.l.b16 %v393
    %v402 = vunpack.c.l.b16 %v394
    %v403 = vunpack.c.l.b16 %v395
    %v404 = vunpack.c.l.b16 %v396
    %v405 = vpack.c.b16 %v402, %v401
    %v406 = vpack.c.b16 %v404, %v403
    %409 = vmatpush.bf16.msra.mxu0 0
    %410 = vmatpush.bf16.msra.mxu0 0
    %411 = vmatpush.bf16.msra.mxu0 0
    %412 = vmatpush.bf16.msra.mxu0 0
    %413 = vmatpush.bf16.msra.mxu0 0
    %414 = vmatpush.bf16.msra.mxu0 0
    %415 = vmatpush.bf16.msra.mxu0 %v406
    %416 = vmatpush.bf16.msra.mxu0 %v405
    %417 = vmatmul.bf16.gmra.mxu0 %v129
    %v418 = vpop.f32.mrf.mxu0
    %v419 = vadd.f32 0.0, %v418
    %v420 = vpop.f32.mrf.mxu0
    %v421 = vadd.f32 0.0, %v420
    %422 = vmatmul.bf16.gmra.mxu0 %v132
    %v423 = vpop.f32.mrf.mxu0
    %v424 = vadd.f32 0.0, %v423
    %v425 = vpop.f32.mrf.mxu0
    %v426 = vadd.f32 0.0, %v425
    %427 = vmatmul.bf16.gmra.mxu0 %v135
    %v428 = vpop.f32.mrf.mxu0
    %v429 = vadd.f32 0.0, %v428
    %v430 = vpop.f32.mrf.mxu0
    %v431 = vadd.f32 0.0, %v430
    %432 = vdwg.mxu0
    %v433 = vrot.slane %v419, 5
    %v434 = vrot.slane %v421, 5
    %v435 = vrot.slane %v424, 5
    %v436 = vrot.slane %v426, 5
    %v437 = vrot.slane %v429, 5
    %v438 = vrot.slane %v431, 5
    %vm439 = vcmp.lt.s32.totalorder %v168, 3
    %v440 = vsel %vm439, %v437, %v438
    %v441 = vsel %vm439, %v436, %v437
    %v442 = vsel %vm439, %v435, %v436
    %v443 = vsel %vm439, %v434, %v435
    %v444 = vsel %vm439, %v433, %v434
    %v445 = vsel %vm439, %v438, %v433
    %v446 = vadd.f32 %v386, %v444
    %v447 = vadd.f32 %v387, %v443
    %v448 = vadd.f32 %v388, %v442
    %v449 = vadd.f32 %v389, %v441
    %v450 = vadd.f32 %v390, %v440
    %v451 = vadd.f32 %v391, %v445
    %s452 = scalar_lea.vmem [#allocation3], 96
    %v453 = vld [vmem:[%s452] sm:$0xf]
    %v454 = vld [vmem:[%s452 + $0x4] sm:$0xf]
    %v455 = vld [vmem:[%s452 + $0x8] sm:$0xf]
    %v456 = vld [vmem:[%s452 + $0xc] sm:$0xf]
    %v461 = vunpack.c.l.b16 %v453
    %v462 = vunpack.c.l.b16 %v454
    %v463 = vunpack.c.l.b16 %v455
    %v464 = vunpack.c.l.b16 %v456
    %v465 = vpack.c.b16 %v462, %v461
    %v466 = vpack.c.b16 %v464, %v463
    %469 = vmatpush.bf16.msra.mxu0 0
    %470 = vmatpush.bf16.msra.mxu0 0
    %471 = vmatpush.bf16.msra.mxu0 0
    %472 = vmatpush.bf16.msra.mxu0 0
    %473 = vmatpush.bf16.msra.mxu0 0
    %474 = vmatpush.bf16.msra.mxu0 0
    %475 = vmatpush.bf16.msra.mxu0 %v466
    %476 = vmatpush.bf16.msra.mxu0 %v465
    %477 = vmatmul.bf16.gmra.mxu0 %v129
    %v478 = vpop.f32.mrf.mxu0
    %v479 = vadd.f32 0.0, %v478
    %v480 = vpop.f32.mrf.mxu0
    %v481 = vadd.f32 0.0, %v480
    %482 = vmatmul.bf16.gmra.mxu0 %v132
    %v483 = vpop.f32.mrf.mxu0
    %v484 = vadd.f32 0.0, %v483
    %v485 = vpop.f32.mrf.mxu0
    %v486 = vadd.f32 0.0, %v485
    %487 = vmatmul.bf16.gmra.mxu0 %v135
    %v488 = vpop.f32.mrf.mxu0
    %v489 = vadd.f32 0.0, %v488
    %v490 = vpop.f32.mrf.mxu0
    %v491 = vadd.f32 0.0, %v490
    %492 = vdwg.mxu0
    %v493 = vrot.slane %v479, 6
    %v494 = vrot.slane %v481, 6
    %v495 = vrot.slane %v484, 6
    %v496 = vrot.slane %v486, 6
    %v497 = vrot.slane %v489, 6
    %v498 = vrot.slane %v491, 6
    %vm499 = vcmp.lt.s32.totalorder %v168, 2
    %v500 = vsel %vm499, %v497, %v498
    %v501 = vsel %vm499, %v496, %v497
    %v502 = vsel %vm499, %v495, %v496
    %v503 = vsel %vm499, %v494, %v495
    %v504 = vsel %vm499, %v493, %v494
    %v505 = vsel %vm499, %v498, %v493
    %v506 = vadd.f32 %v446, %v504
    %v507 = vadd.f32 %v447, %v503
    %v508 = vadd.f32 %v448, %v502
    %v509 = vadd.f32 %v449, %v501
    %v510 = vadd.f32 %v450, %v500
    %v511 = vadd.f32 %v451, %v505
    %v512 = vld [vmem:[%s5] sm:$0x1]
    %v514 = vperm.slane %v512, 0
    %v516 = vadd.f32 %v506, %v514
    %v517 = vadd.f32 %v507, %v514
    %v518 = vadd.f32 %v508, %v514
    %v519 = vadd.f32 %v509, %v514
    %v520 = vadd.f32 %v510, %v514
    %v521 = vadd.f32 %v511, %v514
    %v522 = vmax.f32 %v516, 0.0
    %v523 = vmax.f32 %v517, 0.0
    %v524 = vmax.f32 %v518, 0.0
    %v525 = vmax.f32 %v519, 0.0
    %v526 = vmax.f32 %v520, 0.0
    %v527 = vmax.f32 %v521, 0.0
    %v528 = vadd.s32 %v168, 8
    %v529 = vadd.s32 %v168, 16
    %vm530 = vcmp.lt.s32.totalorder %v168, 8
    %vm531 = vcmp.lt.s32.totalorder %v528, 8
    %vm532 = vcmp.lt.s32.totalorder %v529, 8
    %v533 = vsel %vm530, %v522, 0.0
    %v534 = vsel %vm531, %v523, 0.0
    %v535 = vsel %vm532, %v524, 0.0
    %v536 = vsel %vm530, %v525, 0.0
    %v537 = vsel %vm531, %v526, 0.0
    %v538 = vsel %vm532, %v527, 0.0
    %v539 = vsel %vm127, %v533, -inf
    %v540 = vsel %vm127, %v534, -inf
    %v541 = vsel %vm127, %v535, -inf
    %v542 = vmax.f32 %v539, %v541
    %v543 = vmax.f32 %v542, %v540
    %v544 = vrot.slane %v543, 4
    %v545 = vmax.f32 %v543, %v544
    %v546 = vrot.slane %v545, 2
    %v547 = vmax.f32 %v545, %v546
    %v548 = vrot.slane %v547, 1
    %v549 = vmax.f32 %v547, %v548
    %v550 = vsel %vm127, %v536, -inf
    %v551 = vsel %vm127, %v537, -inf
    %v552 = vsel %vm127, %v538, -inf
    %v553 = vmax.f32 %v550, %v552
    %v554 = vmax.f32 %v553, %v551
    %v555 = vrot.slane %v554, 4
    %v556 = vmax.f32 %v554, %v555
    %v557 = vrot.slane %v556, 2
    %v558 = vmax.f32 %v556, %v557
    %v559 = vrot.slane %v558, 1
    %v560 = vmax.f32 %v558, %v559
    %vm563 = vcmask 1041409
    %v564 = vsel %vm563, %v560, %v549
    %v566 = vmul.f32 %v84, %v564
    %v567 = vld [vmem:[%s6] sm:$0x1]
    %v569 = vperm.slane %v567, 0
    %v571 = vmul.f32 %v566, %v569
    %vm572 = vcmask 254976
    %v573 = vsel %vm572, %v571, 0.0
    %574 = vadd.xlane.f32.xlu0 %v573
    %v575 = vpop.xlane.xlu0 %574
    %s576 = sld [smem:[#allocation2]]
    %v577 = vstv %s576
    %v578 = vadd.f32 %v575, %v577
    %v579 = vxor.u32 %v578, 2147483648
    %v580 = vmul.f32 %v579, 1.442695
    %v581 = vpow.pop %v580
    %v582 = vadd.f32 %v581, 1.0
    %v583 = vrcp.pop %v582
    %v584 = vmul.f32 %v582, %v583
    %v585 = vsub.f32 1.0, %v584
    %v586 = vmul.f32 %v583, %v585
    %v587 = vadd.f32 %v583, %v586
    %vm588 = vweird.f32 %v582
    %vm589 = vweird.f32 %v583
    %vm590 = vmor %vm588, %vm589
    %v591 = vsel %vm590, %v583, %v587
    %v592 = vand.u32 2147483647, %v582
    %vm593 = vcmp.eq.f32.partialorder %v592, 8.507059e+37
    %v594 = vand.u32 %v582, 2147483648
    %v595 = vor.u32 1.1754944e-38, %v594
    %v596 = vsel %vm593, %v595, %v591
    %v597 = vmul.f32 1.0, %v596
    %vm598 = vcmask 1024
    %599 = vst.msk [vmem:[%s8] sm:$0x3] %vm598, %v597
    // Predicated region
    $region38: #{tpu_custom_call.1} parent=1 // pred_check
      _
    $region39: #{tpu_custom_call.1} parent=1 // pred_check_branch
      %601 = sbr.rel (0) target = $region41
    $region40: #{tpu_custom_call.1} parent=1 // pred_region
      _
    $region41: #{tpu_custom_call.1} parent=1 // pred_fallthru
      _
    // Predicated region
    $region42: #{tpu_custom_call.1} parent=1 // pred_check
      _
    $region43: #{tpu_custom_call.1} parent=1 // pred_check_branch
      %603 = sbr.rel (0) target = $region45
    $region44: #{tpu_custom_call.1} parent=1 // pred_region
      _
    $region45: #{tpu_custom_call.1} parent=1 // pred_fallthru
      _
    %604 = vsyncpa [#allocation4], 1

</llo_original>
